<compile_context>
chip_gen: v6e
topology: v6e:2x2x1
jax: 0.10.0
libtpu: 0.0.40
codegen_flags: <defaults>
</compile_context>

<pallas_src>
import jax
import jax.numpy as jnp
from jax import lax
from jax.experimental import pallas as pl
from jax.experimental.pallas import tpu as pltpu


def _critic_kernel(xt_ref, w1_ref, b1_ref, w2_ref, b2_ref, w3_ref, b3_ref,
                   o_ref):
    """Feature-major forward: every intermediate keeps TILE_B on the lane axis."""
    # Layer 1: contract (in_dim, 64) with (in_dim, TILE_B) over in_dim
    #          -> (64, TILE_B), f32 accumulation on the MXU.
    h1 = lax.dot_general(w1_ref[...], xt_ref[...],
                         dimension_numbers=(((0,), (0,)), ((), ())),
                         preferred_element_type=jnp.float32)
    h1 = jnp.maximum(h1 + b1_ref[...], 0.0)            # ReLU (f32 elementwise)

    # Layer 2: (64, 64) x (64, TILE_B) -> (64, TILE_B).
    h2 = lax.dot_general(w2_ref[...], h1.astype(w2_ref.dtype),
                         dimension_numbers=(((0,), (0,)), ((), ())),
                         preferred_element_type=jnp.float32)
    h2 = jnp.maximum(h2 + b2_ref[...], 0.0)            # ReLU

    # Layer 3: (64, 1) x (64, TILE_B) -> (1, TILE_B) — lane-dense output tile.
    z = lax.dot_general(w3_ref[...], h2.astype(w3_ref.dtype),
                        dimension_numbers=(((0,), (0,)), ((), ())),
                        preferred_element_type=jnp.float32)
    z = z + b3_ref[0, 0]                                # scalar bias from SMEM

    o_ref[...] = (-jax.nn.sigmoid(z)).astype(o_ref.dtype)


def _round_up(x, m):
    return ((x + m - 1) // m) * m


def critic_forward(state, action, goal, params, *, tile_b=None, min_tiles=2,
                   max_tile_b=8192, stream_dtype=jnp.float32):
    """DDPG Critic forward pass as a single tiled Pallas TPU kernel.

    state:  [B, state_dim]   float32
    action: [B, action_dim]  float32
    goal:   [B, state_dim]   float32
    returns [B, 1]           float32

    tile_b:       lane-tile size (auto-sized from B when None).
    min_tiles:    minimum grid steps when auto-sizing (2 keeps both v7x TCs busy).
    stream_dtype: dtype used to stream activations/weights (jnp.bfloat16 on
                  v6e/v7x halves HBM traffic); accumulation/elementwise stay f32.
    """
    w1, b1, w2, b2, w3, b3 = params
    B, sd = state.shape
    ad = action.shape[1]
    assert goal.shape[1] == sd
    in_dim, h = w1.shape
    assert in_dim == sd + ad + sd

    # --- tile selection: few, large, 128-lane-aligned tiles -----------------
    if tile_b is None:
        target = pl.cdiv(B, max(min_tiles, 1)) if B > 128 else B
        tile_b = min(max_tile_b, max(128, _round_up(target, 128)))
    else:
        tile_b = max(128, _round_up(int(tile_b), 128))
    num_tiles = pl.cdiv(B, tile_b)
    b_pad = num_tiles * tile_b

    # --- feature-major input: one (in_dim, B_pad) slab -----------------------
    x = jnp.concatenate([state, action, goal], axis=1).astype(stream_dtype)
    xt = x.T                                           # (in_dim, B)
    if b_pad != B:
        xt = jnp.pad(xt, ((0, 0), (0, b_pad - B)))     # pad padded lanes -> 0

    w1_c = w1.astype(stream_dtype)                     # (in_dim, h)
    w2_c = w2.astype(stream_dtype)                     # (h, h)
    w3_c = w3.astype(stream_dtype)                     # (h, 1)
    b1_col = b1.reshape(h, 1).astype(jnp.float32)      # column biases broadcast
    b2_col = b2.reshape(h, 1).astype(jnp.float32)      #   over the lane axis
    b3_s = b3.reshape(1, 1).astype(jnp.float32)        # scalar, lives in SMEM

    const = lambda shape: pl.BlockSpec(shape, lambda i: (0, 0))

    el = jnp.dtype(stream_dtype).itemsize
    cost = pl.CostEstimate(
        flops=2 * b_pad * (in_dim * h + h * h + h),
        transcendentals=b_pad,
        bytes_accessed=(in_dim * b_pad * el                  # input slab
                        + (in_dim * h + h * h + h) * el      # weights
                        + (2 * h + 1) * 4                    # biases
                        + b_pad * 4),                        # output
    )

    out = pl.pallas_call(
        _critic_kernel,
        out_shape=jax.ShapeDtypeStruct((1, b_pad), jnp.float32),
        grid=(num_tiles,),
        in_specs=[
            pl.BlockSpec((in_dim, tile_b), lambda i: (0, i)),   # x^T tile
            const((in_dim, h)),                                 # W1 (resident)
            const((h, 1)),                                      # b1
            const((h, h)),                                      # W2
            const((h, 1)),                                      # b2
            const((h, 1)),                                      # W3
            pl.BlockSpec(memory_space=pltpu.MemorySpace.SMEM),  # b3 scalar
        ],
        out_specs=pl.BlockSpec((1, tile_b), lambda i: (0, i)),
        compiler_params=pltpu.CompilerParams(
            dimension_semantics=("parallel",),
            vmem_limit_bytes=48 * 1024 * 1024,
        ),
        cost_estimate=cost,
    )(xt, w1_c, b1_col, w2_c, b2_col, w3_c, b3_s)

    # (1, B_pad) -> (B_pad, 1) -> (B, 1); padded lanes are sliced off.
    return out.reshape(b_pad, 1)[:B]


def init_params(state_dim, action_dim, key):
    """Deterministic synthetic parameter init (shapes match the nn.Linear stack)."""
    in_dim = state_dim + action_dim + state_dim
    h = 64
    k1, k2, k3, k4, k5, k6 = jax.random.split(key, 6)

    def uniform(k, shape, fan_in):
        bound = 1.0 / jnp.sqrt(jnp.float32(fan_in))
        return jax.random.uniform(k, shape, jnp.float32, -bound, bound)

    # Stored as (in, out); biases kept 2-D (1, out).
    w1 = uniform(k1, (in_dim, h), in_dim)
    b1 = uniform(k2, (1, h), in_dim)
    w2 = uniform(k3, (h, h), h)
    b2 = uniform(k4, (1, h), h)
    w3 = uniform(k5, (h, 1), h)
    b3 = uniform(k6, (1, 1), h)
    return (w1, b1, w2, b2, w3, b3)


def _reference_forward(state, action, goal, params):
    """Pure-JAX reference (mirrors the PyTorch module)."""
    w1, b1, w2, b2, w3, b3 = params
    x = jnp.concatenate([state, action, goal], axis=1)
    h1 = jnp.maximum(x @ w1 + b1, 0.0)
    h2 = jnp.maximum(h1 @ w2 + b2, 0.0)
    return -jax.nn.sigmoid(h2 @ w3 + b3)


if __name__ == "__main__":
    state_dim, action_dim, batch = 8, 4, 2

    key = jax.random.PRNGKey(0)
    kp, ks, ka, kg = jax.random.split(key, 4)

    params = init_params(state_dim, action_dim, kp)
    state = jax.random.normal(ks, (batch, state_dim), jnp.float32)
    action = jax.random.normal(ka, (batch, action_dim), jnp.float32)
    goal = jax.random.normal(kg, (batch, state_dim), jnp.float32)

    # Small batch, auto-tiled (single 128-lane tile), f32 streaming.
    out = jax.block_until_ready(critic_forward(state, action, goal, params))
    ref = _reference_forward(state, action, goal, params)
    assert out.shape == (batch, 1)
    assert jnp.allclose(out, ref, atol=1e-5, rtol=1e-5)

    # Multi-tile grid + ragged-batch padding path (explicit small tile).
    batch2 = 300
    ks2, ka2, kg2 = jax.random.split(jax.random.PRNGKey(1), 3)
    state2 = jax.random.normal(ks2, (batch2, state_dim), jnp.float32)
    action2 = jax.random.normal(ka2, (batch2, action_dim), jnp.float32)
    goal2 = jax.random.normal(kg2, (batch2, state_dim), jnp.float32)
    out2 = jax.block_until_ready(
        critic_forward(state2, action2, goal2, params, tile_b=128))
    ref2 = _reference_forward(state2, action2, goal2, params)
    assert out2.shape == (batch2, 1)
    assert jnp.allclose(out2, ref2, atol=1e-5, rtol=1e-5)

    # Auto tile sizing (collapses to 2 tiles) + bf16 streaming path
    # (recommended on v6e/v7x) — looser tolerance for the bf16 operands.
    out3 = jax.block_until_ready(
        critic_forward(state2, action2, goal2, params,
                       stream_dtype=jnp.bfloat16))
    assert out3.shape == (batch2, 1)
    assert jnp.allclose(out3, ref2, atol=2e-2, rtol=2e-2)

    print("KERNEL_OK")
</pallas_src>

<mosaic_0001>
module attributes {stable_mosaic.version = 11 : i64} {
  func.func @_critic_kernel(%arg0: i32, %arg1: memref<20x128xf32, #tpu.memory_space<vmem>>, %arg2: memref<20x64xf32, #tpu.memory_space<vmem>>, %arg3: memref<64x1xf32, #tpu.memory_space<vmem>>, %arg4: memref<64x64xf32, #tpu.memory_space<vmem>>, %arg5: memref<64x1xf32, #tpu.memory_space<vmem>>, %arg6: memref<64x1xf32, #tpu.memory_space<vmem>>, %arg7: memref<1x1xf32, #tpu.memory_space<smem>>, %arg8: memref<1x128xf32, #tpu.memory_space<vmem>>) attributes {dimension_semantics = [#tpu.dimension_semantics<parallel>], iteration_bounds = array<i64: 1>, scalar_prefetch = 0 : i64, scratch_operands = 0 : i64, tpu.core_type = #tpu.core_type<tc>, window_params = [{transform_indices = @transform_0, window_bounds = array<i64: 20, 128>}, {pipeline_mode = #tpu.pipeline_mode<synchronous>, transform_indices = @transform_1, window_bounds = array<i64: 20, 64>}, {pipeline_mode = #tpu.pipeline_mode<synchronous>, transform_indices = @transform_2, window_bounds = array<i64: 64, 1>}, {pipeline_mode = #tpu.pipeline_mode<synchronous>, transform_indices = @transform_3, window_bounds = array<i64: 64, 64>}, {pipeline_mode = #tpu.pipeline_mode<synchronous>, transform_indices = @transform_4, window_bounds = array<i64: 64, 1>}, {pipeline_mode = #tpu.pipeline_mode<synchronous>, transform_indices = @transform_5, window_bounds = array<i64: 64, 1>}, {transform_indices = @transform_6, window_bounds = array<i64: 1, 1>}, {transform_indices = @transform_7, window_bounds = array<i64: 1, 128>}]} {
    %c0 = arith.constant 0 : index
    %c0_0 = arith.constant 0 : index
    %0 = vector.load %arg2[%c0, %c0_0] : memref<20x64xf32, #tpu.memory_space<vmem>>, vector<20x64xf32>
    %c0_1 = arith.constant 0 : index
    %c0_2 = arith.constant 0 : index
    %1 = vector.load %arg1[%c0_1, %c0_2] : memref<20x128xf32, #tpu.memory_space<vmem>>, vector<20x128xf32>
    %cst = arith.constant dense<0.000000e+00> : vector<64x128xf32>
    %2 = tpu.matmul %0, %1, %cst {dimension_numbers = #tpu.dot_dimension_numbers<[0], [0], [1], [1], [0, 1, 1, 1], [], []>} : vector<20x64xf32>, vector<20x128xf32>, vector<64x128xf32> -> vector<64x128xf32>
    %c0_3 = arith.constant 0 : index
    %c0_4 = arith.constant 0 : index
    %3 = vector.load %arg3[%c0_3, %c0_4] : memref<64x1xf32, #tpu.memory_space<vmem>>, vector<64x1xf32>
    %4 = vector.broadcast %3 : vector<64x1xf32> to vector<64x128xf32>
    %5 = arith.addf %2, %4 : vector<64x128xf32>
    %cst_5 = arith.constant 0.000000e+00 : f32
    %6 = vector.broadcast %cst_5 : f32 to vector<64x128xf32>
    %7 = arith.maximumf %5, %6 : vector<64x128xf32>
    %c0_6 = arith.constant 0 : index
    %c0_7 = arith.constant 0 : index
    %8 = vector.load %arg4[%c0_6, %c0_7] : memref<64x64xf32, #tpu.memory_space<vmem>>, vector<64x64xf32>
    %cst_8 = arith.constant dense<0.000000e+00> : vector<64x128xf32>
    %9 = tpu.matmul %8, %7, %cst_8 {dimension_numbers = #tpu.dot_dimension_numbers<[0], [0], [1], [1], [0, 1, 1, 1], [], []>} : vector<64x64xf32>, vector<64x128xf32>, vector<64x128xf32> -> vector<64x128xf32>
    %c0_9 = arith.constant 0 : index
    %c0_10 = arith.constant 0 : index
    %10 = vector.load %arg5[%c0_9, %c0_10] : memref<64x1xf32, #tpu.memory_space<vmem>>, vector<64x1xf32>
    %11 = vector.broadcast %10 : vector<64x1xf32> to vector<64x128xf32>
    %12 = arith.addf %9, %11 : vector<64x128xf32>
    %cst_11 = arith.constant 0.000000e+00 : f32
    %13 = vector.broadcast %cst_11 : f32 to vector<64x128xf32>
    %14 = arith.maximumf %12, %13 : vector<64x128xf32>
    %c0_12 = arith.constant 0 : index
    %c0_13 = arith.constant 0 : index
    %15 = vector.load %arg6[%c0_12, %c0_13] : memref<64x1xf32, #tpu.memory_space<vmem>>, vector<64x1xf32>
    %cst_14 = arith.constant dense<0.000000e+00> : vector<1x128xf32>
    %16 = tpu.matmul %15, %14, %cst_14 {dimension_numbers = #tpu.dot_dimension_numbers<[0], [0], [1], [1], [0, 1, 1, 1], [], []>} : vector<64x1xf32>, vector<64x128xf32>, vector<1x128xf32> -> vector<1x128xf32>
    %c0_15 = arith.constant 0 : index
    %c0_16 = arith.constant 0 : index
    %17 = memref.load %arg7[%c0_15, %c0_16] : memref<1x1xf32, #tpu.memory_space<smem>>
    %18 = vector.broadcast %17 : f32 to vector<1x128xf32>
    %19 = arith.addf %16, %18 : vector<1x128xf32>
    %20 = arith.negf %19 : vector<1x128xf32>
    %21 = math.exp %20 : vector<1x128xf32>
    %cst_17 = arith.constant 1.000000e+00 : f32
    %22 = vector.broadcast %cst_17 : f32 to vector<1x128xf32>
    %23 = arith.addf %22, %21 : vector<1x128xf32>
    %24 = arith.divf %22, %23 : vector<1x128xf32>
    %cst_18 = arith.constant 0.000000e+00 : f32
    %25 = vector.broadcast %cst_18 : f32 to vector<1x128xf32>
    %26 = arith.subf %25, %24 : vector<1x128xf32>
    %c0_19 = arith.constant 0 : index
    %c0_20 = arith.constant 0 : index
    %27 = vector.load %arg8[%c0_19, %c0_20] : memref<1x128xf32, #tpu.memory_space<vmem>>, vector<1x128xf32>
    tpu.vector_store %arg8[%c0_19, %c0_20], %26 {strides = array<i32>} : memref<1x128xf32, #tpu.memory_space<vmem>>, vector<1x128xf32>,
    return
  }
  func.func @transform_0(%arg0: i32) -> (i32, i32) {
    %c0_i32 = arith.constant 0 : i32
    %c0_i32_0 = arith.constant 0 : i32
    return %c0_i32, %arg0 : i32, i32
  }
  func.func @transform_1(%arg0: i32) -> (i32, i32) {
    %c0_i32 = arith.constant 0 : i32
    %c0_i32_0 = arith.constant 0 : i32
    %c0_i32_1 = arith.constant 0 : i32
    return %c0_i32, %c0_i32_0 : i32, i32
  }
  func.func @transform_2(%arg0: i32) -> (i32, i32) {
    %c0_i32 = arith.constant 0 : i32
    %c0_i32_0 = arith.constant 0 : i32
    %c0_i32_1 = arith.constant 0 : i32
    return %c0_i32, %c0_i32_0 : i32, i32
  }
  func.func @transform_3(%arg0: i32) -> (i32, i32) {
    %c0_i32 = arith.constant 0 : i32
    %c0_i32_0 = arith.constant 0 : i32
    %c0_i32_1 = arith.constant 0 : i32
    return %c0_i32, %c0_i32_0 : i32, i32
  }
  func.func @transform_4(%arg0: i32) -> (i32, i32) {
    %c0_i32 = arith.constant 0 : i32
    %c0_i32_0 = arith.constant 0 : i32
    %c0_i32_1 = arith.constant 0 : i32
    return %c0_i32, %c0_i32_0 : i32, i32
  }
  func.func @transform_5(%arg0: i32) -> (i32, i32) {
    %c0_i32 = arith.constant 0 : i32
    %c0_i32_0 = arith.constant 0 : i32
    %c0_i32_1 = arith.constant 0 : i32
    return %c0_i32, %c0_i32_0 : i32, i32
  }
  func.func @transform_6(%arg0: i32) -> (i32, i32) {
    %c0_i32 = arith.constant 0 : i32
    %c0_i32_0 = arith.constant 0 : i32
    %c0_i32_1 = arith.constant 0 : i32
    return %c0_i32, %c0_i32_0 : i32, i32
  }
  func.func @transform_7(%arg0: i32) -> (i32, i32) {
    %c0_i32 = arith.constant 0 : i32
    %c0_i32_0 = arith.constant 0 : i32
    return %c0_i32, %arg0 : i32, i32
  }
}

</mosaic_0001>

<llo_original>
// kernel: tpu_custom_call.1
$region0: #{tpu_custom_call.1}
  #allocation0 [shape = 'u32[]', space=smem, size = 0x4, offset = 0x4, fixed_abs, tag = 'smem constant byte address 0x4 - core index']
  #allocation1 [shape = 'u32[144,128]{1,0:T(1,128)}', space=vmem, size = 0x12000, scoped, tag = 'internal scratch']
  #allocation2 [shape = 'f32[1,1]{1,0:T(1,128)S(6)}', space=smem, size = 0x200, scoped, tag = 'scoped memory for tpu_custom_call.1']
  %s0 = inlined_call_operand.vmem [shape: f32[20,128], index: 0, kind: input, shape index: {}]
  %s1 = inlined_call_operand.vmem [shape: f32[20,64], index: 1, kind: input, shape index: {}]
  %s2 = inlined_call_operand.vmem [shape: f32[64,1], index: 2, kind: input, shape index: {}]
  %s3 = inlined_call_operand.vmem [shape: f32[64,64], index: 3, kind: input, shape index: {}]
  %s4 = inlined_call_operand.vmem [shape: f32[64,1], index: 4, kind: input, shape index: {}]
  %s5 = inlined_call_operand.vmem [shape: f32[64,1], index: 5, kind: input, shape index: {}]
  %s6 = inlined_call_operand.<no memory space> [shape: f32[1,1], index: 6, kind: input, shape index: {}]
  %s7 = inlined_call_operand.hbm [shape: f32[1,128], index: 7, kind: output, shape index: {}]
  %s8 = sld [smem:[#allocation0]]
  $region38: #{tpu_custom_call.1} parent=0
    _
  %s10 = ssub.s32 1, %s8
  %s11 = scalar_select 0, %s10, %s8
  %12 = sst [smem:[#allocation2]] %s6
  $region1: #{tpu_custom_call.1} parent=0
    #allocation3 [shape = 'u8[512]{0}', space=vmem, size = 0x400, scoped, tag = 'output window, operand 0, single buffered']
    #allocation4 [shape = 's32[1]{0}', space=sflag, size = 0x4, scoped, tag = 'scoped memory for tpu_custom_call.1']
    %13 = vsyncpa [#allocation4], 0
    // Predicated region
    $region2: #{tpu_custom_call.1} parent=1 // pred_check
      _
    $region3: #{tpu_custom_call.1} parent=1 // pred_check_branch
      %15 = sbr.rel (0) target = $region5
    $region4: #{tpu_custom_call.1} parent=1 // pred_region
      _
    $region5: #{tpu_custom_call.1} parent=1 // pred_fallthru
      _
    // Predicated region
    $region6: #{tpu_custom_call.1} parent=1 // pred_check
      _
    $region7: #{tpu_custom_call.1} parent=1 // pred_check_branch
      %17 = sbr.rel (0) target = $region9
    $region8: #{tpu_custom_call.1} parent=1 // pred_region
      _
    $region9: #{tpu_custom_call.1} parent=1 // pred_fallthru
      _
    // Predicated region
    $region10: #{tpu_custom_call.1} parent=1 // pred_check
      _
    $region11: #{tpu_custom_call.1} parent=1 // pred_check_branch
      %19 = sbr.rel (0) target = $region13
    $region12: #{tpu_custom_call.1} parent=1 // pred_region
      _
    $region13: #{tpu_custom_call.1} parent=1 // pred_fallthru
      _
    // Predicated region
    $region14: #{tpu_custom_call.1} parent=1 // pred_check
      _
    $region15: #{tpu_custom_call.1} parent=1 // pred_check_branch
      %21 = sbr.rel (0) target = $region17
    $region16: #{tpu_custom_call.1} parent=1 // pred_region
      _
    $region17: #{tpu_custom_call.1} parent=1 // pred_fallthru
      _
    // Predicated region
    $region18: #{tpu_custom_call.1} parent=1 // pred_check
      _
    $region19: #{tpu_custom_call.1} parent=1 // pred_check_branch
      %23 = sbr.rel (0) target = $region21
    $region20: #{tpu_custom_call.1} parent=1 // pred_region
      _
    $region21: #{tpu_custom_call.1} parent=1 // pred_fallthru
      _
    // Predicated region
    $region22: #{tpu_custom_call.1} parent=1 // pred_check
      _
    $region23: #{tpu_custom_call.1} parent=1 // pred_check_branch
      %25 = sbr.rel (0) target = $region25
    $region24: #{tpu_custom_call.1} parent=1 // pred_region
      _
    $region25: #{tpu_custom_call.1} parent=1 // pred_fallthru
      _
    // Predicated region
    $region26: #{tpu_custom_call.1} parent=1 // pred_check
      _
    $region27: #{tpu_custom_call.1} parent=1 // pred_check_branch
      %27 = sbr.rel (0) target = $region29
    $region28: #{tpu_custom_call.1} parent=1 // pred_region
      _
    $region29: #{tpu_custom_call.1} parent=1 // pred_fallthru
      _
    %v28 = vld [vmem:[%s1] sm:$0xff]
    %v29 = vld [vmem:[%s1 + $0x8] sm:$0xff]
    %v30 = vld [vmem:[%s1 + $0x10] sm:$0xf]
    %v31 = vld [vmem:[%s0] sm:$0xff]
    %v32 = vld [vmem:[%s0 + $0x8] sm:$0xff]
    %v33 = vld [vmem:[%s0 + $0x10] sm:$0xf]
    %v34 = vld [vmem:[%s2] sm:$0xff]
    %v35 = vld [vmem:[%s2 + $0x8] sm:$0xff]
    %v36 = vld [vmem:[%s2 + $0x10] sm:$0xff]
    %v37 = vld [vmem:[%s2 + $0x18] sm:$0xff]
    %v38 = vld [vmem:[%s2 + $0x20] sm:$0xff]
    %v39 = vld [vmem:[%s2 + $0x28] sm:$0xff]
    %v40 = vld [vmem:[%s2 + $0x30] sm:$0xff]
    %v41 = vld [vmem:[%s2 + $0x38] sm:$0xff]
    %43 = vset.pattern.permute.xlu0 0
    %44 = vperm.xlu0 %43, %v34
    %v45 = vpop.permute.xlu0 %44
    %48 = vset.pattern.permute.xlu0 0
    %49 = vperm.xlu0 %48, %v35
    %v50 = vpop.permute.xlu0 %49
    %53 = vset.pattern.permute.xlu0 0
    %54 = vperm.xlu0 %53, %v36
    %v55 = vpop.permute.xlu0 %54
    %58 = vset.pattern.permute.xlu0 0
    %59 = vperm.xlu0 %58, %v37
    %v60 = vpop.permute.xlu0 %59
    %63 = vset.pattern.permute.xlu0 0
    %64 = vperm.xlu0 %63, %v38
    %v65 = vpop.permute.xlu0 %64
    %68 = vset.pattern.permute.xlu0 0
    %69 = vperm.xlu0 %68, %v39
    %v70 = vpop.permute.xlu0 %69
    %73 = vset.pattern.permute.xlu0 0
    %74 = vperm.xlu0 %73, %v40
    %v75 = vpop.permute.xlu0 %74
    %78 = vset.pattern.permute.xlu0 0
    %79 = vperm.xlu0 %78, %v41
    %v80 = vpop.permute.xlu0 %79
    %82 = vxpose.xlu0.b32.start [1/16] %v28, 128
    %83 = vxpose.xlu0.b32.cont [2/16] %v29, 128
    %84 = vxpose.xlu0.b32.cont [3/16] %v30, 128
    %85 = vxpose.xlu0.b32.cont [4/16] 0.0, 128
    %86 = vxpose.xlu0.b32.cont [5/16] 0.0, 128
    %87 = vxpose.xlu0.b32.cont [6/16] 0.0, 128
    %88 = vxpose.xlu0.b32.cont [7/16] 0.0, 128
    %89 = vxpose.xlu0.b32.cont [8/16] 0.0, 128
    %90 = vxpose.xlu0.b32.cont [9/16] 0.0, 128
    %91 = vxpose.xlu0.b32.cont [10/16] 0.0, 128
    %92 = vxpose.xlu0.b32.cont [11/16] 0.0, 128
    %93 = vxpose.xlu0.b32.cont [12/16] 0.0, 128
    %94 = vxpose.xlu0.b32.cont [13/16] 0.0, 128
    %95 = vxpose.xlu0.b32.cont [14/16] 0.0, 128
    %96 = vxpose.xlu0.b32.cont [15/16] 0.0, 128
    %97 = vxpose.xlu0.b32.end [16/16] 0.0, 128
    %v98 = vpop.trf.xlu0
    %v99 = vpop.trf.xlu0
    %v100 = vpop.trf.xlu0
    %v101 = vpop.trf.xlu0
    %v102 = vpop.trf.xlu0
    %v103 = vpop.trf.xlu0
    %v104 = vpop.trf.xlu0
    %v105 = vpop.trf.xlu0
    %v106 = vpop.trf.xlu0
    %v107 = vpop.trf.xlu0
    %v108 = vpop.trf.xlu0
    %v109 = vpop.trf.xlu0
    %v110 = vpop.trf.xlu0
    %v111 = vpop.trf.xlu0
    %v112 = vpop.trf.xlu0
    %v113 = vpop.trf.xlu0
    %vm114 = vcmask 162816
    %v116 = vsel %vm114, %v98, 0
    %v119 = vsel %vm114, %v99, 0
    %v122 = vsel %vm114, %v100, 0
    %v125 = vsel %vm114, %v101, 0
    %v128 = vsel %vm114, %v102, 0
    %v131 = vsel %vm114, %v103, 0
    %v134 = vsel %vm114, %v104, 0
    %v137 = vsel %vm114, %v105, 0
    %vm139 = vcmask 1043456
    %v141 = vsel %vm139, %v33, 0
    %143 = vmatprep.subr.mxu0 0.0
    %144 = vmatpush1.msra.mxu0 0.0
    %145 = vmatprep.subr.mxu0 0.0
    %146 = vmatpush1.msra.mxu0 0.0
    %147 = vmatprep.subr.mxu0 0.0
    %148 = vmatpush1.msra.mxu0 0.0
    %149 = vmatprep.subr.mxu0 0.0
    %150 = vmatpush1.msra.mxu0 0.0
    %151 = vmatprep.subr.mxu0 0.0
    %152 = vmatpush1.msra.mxu0 0.0
    %153 = vmatprep.subr.mxu0 0.0
    %154 = vmatpush1.msra.mxu0 0.0
    %155 = vmatprep.subr.mxu0 0.0
    %156 = vmatpush1.msra.mxu0 0.0
    %157 = vmatprep.subr.mxu0 0.0
    %158 = vmatpush1.msra.mxu0 0.0
    %159 = vmatprep.subr.mxu0 0.0
    %160 = vmatpush1.msra.mxu0 0.0
    %161 = vmatprep.subr.mxu0 0.0
    %162 = vmatpush1.msra.mxu0 0.0
    %163 = vmatprep.subr.mxu0 0.0
    %164 = vmatpush1.msra.mxu0 0.0
    %165 = vmatprep.subr.mxu0 0.0
    %166 = vmatpush1.msra.mxu0 0.0
    %167 = vmatprep.subr.mxu0 0.0
    %168 = vmatpush1.msra.mxu0 0.0
    %169 = vmatprep.subr.mxu0 0.0
    %170 = vmatpush1.msra.mxu0 %v141
    %171 = vmatprep.subr.mxu0 0.0
    %172 = vmatpush1.msra.mxu0 %v32
    %173 = vmatprep.subr.mxu0 0.0
    %174 = vmatpush1.msra.mxu0 %v31
    %175 = vmatprep.subr.mxu0 0.0
    %176 = vmatpush2.msra.mxu0 0.0
    %177 = vmatprep.subr.mxu0 0.0
    %178 = vmatpush2.msra.mxu0 0.0
    %179 = vmatprep.subr.mxu0 0.0
    %180 = vmatpush2.msra.mxu0 0.0
    %181 = vmatprep.subr.mxu0 0.0
    %182 = vmatpush2.msra.mxu0 0.0
    %183 = vmatprep.subr.mxu0 0.0
    %184 = vmatpush2.msra.mxu0 0.0
    %185 = vmatprep.subr.mxu0 0.0
    %186 = vmatpush2.msra.mxu0 0.0
    %187 = vmatprep.subr.mxu0 0.0
    %188 = vmatpush2.msra.mxu0 0.0
    %189 = vmatprep.subr.mxu0 0.0
    %190 = vmatpush2.msra.mxu0 0.0
    %191 = vmatprep.subr.mxu0 0.0
    %192 = vmatpush2.msra.mxu0 0.0
    %193 = vmatprep.subr.mxu0 0.0
    %194 = vmatpush2.msra.mxu0 0.0
    %195 = vmatprep.subr.mxu0 0.0
    %196 = vmatpush2.msra.mxu0 0.0
    %197 = vmatprep.subr.mxu0 0.0
    %198 = vmatpush2.msra.mxu0 0.0
    %199 = vmatprep.subr.mxu0 0.0
    %200 = vmatpush2.msra.mxu0 0.0
    %201 = vmatprep.subr.mxu0 0.0
    %202 = vmatpush2.msra.mxu0 0.0
    %203 = vmatprep.subr.mxu0 0.0
    %204 = vmatpush2.msra.mxu0 0.0
    %205 = vmatprep.subr.mxu0 0.0
    %206 = vmatpush2.msra.mxu0 0.0
    %207 = vmatprep.mubr.f32.mxu0 0.0
    %208 = vmatmul.mubr.f32.gmra.mxu0 %v116
    %v209 = vpop.f32.mrf.mxu0
    %v210 = vadd.f32 %v45, %v209
    %v211 = vpop.f32.mrf.mxu0
    %212 = vmatprep.mubr.f32.mxu0 0.0
    %213 = vmatmul.mubr.f32.gmra.mxu0 %v119
    %v214 = vpop.f32.mrf.mxu0
    %v215 = vadd.f32 %v50, %v214
    %v216 = vpop.f32.mrf.mxu0
    %217 = vmatprep.mubr.f32.mxu0 0.0
    %218 = vmatmul.mubr.f32.gmra.mxu0 %v122
    %v219 = vpop.f32.mrf.mxu0
    %v220 = vadd.f32 %v55, %v219
    %v221 = vpop.f32.mrf.mxu0
    %222 = vmatprep.mubr.f32.mxu0 0.0
    %223 = vmatmul.mubr.f32.gmra.mxu0 %v125
    %v224 = vpop.f32.mrf.mxu0
    %v225 = vadd.f32 %v60, %v224
    %v226 = vpop.f32.mrf.mxu0
    %227 = vmatprep.mubr.f32.mxu0 0.0
    %228 = vmatmul.mubr.f32.gmra.mxu0 %v128
    %v229 = vpop.f32.mrf.mxu0
    %v230 = vadd.f32 %v65, %v229
    %v231 = vpop.f32.mrf.mxu0
    %232 = vmatprep.mubr.f32.mxu0 0.0
    %233 = vmatmul.mubr.f32.gmra.mxu0 %v131
    %v234 = vpop.f32.mrf.mxu0
    %v235 = vadd.f32 %v70, %v234
    %v236 = vpop.f32.mrf.mxu0
    %237 = vmatprep.mubr.f32.mxu0 0.0
    %238 = vmatmul.mubr.f32.gmra.mxu0 %v134
    %v239 = vpop.f32.mrf.mxu0
    %v240 = vadd.f32 %v75, %v239
    %v241 = vpop.f32.mrf.mxu0
    %242 = vmatprep.mubr.f32.mxu0 0.0
    %243 = vmatmul.mubr.f32.gmra.mxu0 %v137
    %v244 = vpop.f32.mrf.mxu0
    %v245 = vadd.f32 %v80, %v244
    %v246 = vpop.f32.mrf.mxu0
    %247 = vdwg.mxu0
    %v248 = vmax.f32 %v210, 0.0
    %v249 = vmax.f32 %v215, 0.0
    %v250 = vmax.f32 %v220, 0.0
    %v251 = vmax.f32 %v225, 0.0
    %v252 = vmax.f32 %v230, 0.0
    %v253 = vmax.f32 %v235, 0.0
    %v254 = vmax.f32 %v240, 0.0
    %v255 = vmax.f32 %v245, 0.0
    %v256 = vld [vmem:[%s3] sm:$0xff]
    %v257 = vld [vmem:[%s3 + $0x8] sm:$0xff]
    %v258 = vld [vmem:[%s3 + $0x10] sm:$0xff]
    %v259 = vld [vmem:[%s3 + $0x18] sm:$0xff]
    %v260 = vld [vmem:[%s3 + $0x20] sm:$0xff]
    %v261 = vld [vmem:[%s3 + $0x28] sm:$0xff]
    %v262 = vld [vmem:[%s3 + $0x30] sm:$0xff]
    %v263 = vld [vmem:[%s3 + $0x38] sm:$0xff]
    %v264 = vld [vmem:[%s4] sm:$0xff]
    %v265 = vld [vmem:[%s4 + $0x8] sm:$0xff]
    %v266 = vld [vmem:[%s4 + $0x10] sm:$0xff]
    %v267 = vld [vmem:[%s4 + $0x18] sm:$0xff]
    %v268 = vld [vmem:[%s4 + $0x20] sm:$0xff]
    %v269 = vld [vmem:[%s4 + $0x28] sm:$0xff]
    %v270 = vld [vmem:[%s4 + $0x30] sm:$0xff]
    %v271 = vld [vmem:[%s4 + $0x38] sm:$0xff]
    %273 = vset.pattern.permute.xlu0 0
    %274 = vperm.xlu0 %273, %v264
    %v275 = vpop.permute.xlu0 %274
    %278 = vset.pattern.permute.xlu0 0
    %279 = vperm.xlu0 %278, %v265
    %v280 = vpop.permute.xlu0 %279
    %283 = vset.pattern.permute.xlu0 0
    %284 = vperm.xlu0 %283, %v266
    %v285 = vpop.permute.xlu0 %284
    %288 = vset.pattern.permute.xlu0 0
    %289 = vperm.xlu0 %288, %v267
    %v290 = vpop.permute.xlu0 %289
    %293 = vset.pattern.permute.xlu0 0
    %294 = vperm.xlu0 %293, %v268
    %v295 = vpop.permute.xlu0 %294
    %298 = vset.pattern.permute.xlu0 0
    %299 = vperm.xlu0 %298, %v269
    %v300 = vpop.permute.xlu0 %299
    %303 = vset.pattern.permute.xlu0 0
    %304 = vperm.xlu0 %303, %v270
    %v305 = vpop.permute.xlu0 %304
    %308 = vset.pattern.permute.xlu0 0
    %309 = vperm.xlu0 %308, %v271
    %v310 = vpop.permute.xlu0 %309
    %312 = vxpose.xlu0.b32.start [1/16] %v256, 128
    %313 = vxpose.xlu0.b32.cont [2/16] %v257, 128
    %314 = vxpose.xlu0.b32.cont [3/16] %v258, 128
    %315 = vxpose.xlu0.b32.cont [4/16] %v259, 128
    %316 = vxpose.xlu0.b32.cont [5/16] %v260, 128
    %317 = vxpose.xlu0.b32.cont [6/16] %v261, 128
    %318 = vxpose.xlu0.b32.cont [7/16] %v262, 128
    %319 = vxpose.xlu0.b32.cont [8/16] %v263, 128
    %320 = vxpose.xlu0.b32.cont [9/16] 0.0, 128
    %321 = vxpose.xlu0.b32.cont [10/16] 0.0, 128
    %322 = vxpose.xlu0.b32.cont [11/16] 0.0, 128
    %323 = vxpose.xlu0.b32.cont [12/16] 0.0, 128
    %324 = vxpose.xlu0.b32.cont [13/16] 0.0, 128
    %325 = vxpose.xlu0.b32.cont [14/16] 0.0, 128
    %326 = vxpose.xlu0.b32.cont [15/16] 0.0, 128
    %327 = vxpose.xlu0.b32.end [16/16] 0.0, 128
    %v328 = vpop.trf.xlu0
    %v329 = vpop.trf.xlu0
    %v330 = vpop.trf.xlu0
    %v331 = vpop.trf.xlu0
    %v332 = vpop.trf.xlu0
    %v333 = vpop.trf.xlu0
    %v334 = vpop.trf.xlu0
    %v335 = vpop.trf.xlu0
    %v336 = vpop.trf.xlu0
    %v337 = vpop.trf.xlu0
    %v338 = vpop.trf.xlu0
    %v339 = vpop.trf.xlu0
    %v340 = vpop.trf.xlu0
    %v341 = vpop.trf.xlu0
    %v342 = vpop.trf.xlu0
    %v343 = vpop.trf.xlu0
    %vm344 = vcmask 523264
    %v346 = vsel %vm344, %v328, 0
    %v349 = vsel %vm344, %v329, 0
    %v352 = vsel %vm344, %v330, 0
    %v355 = vsel %vm344, %v331, 0
    %v358 = vsel %vm344, %v332, 0
    %v361 = vsel %vm344, %v333, 0
    %v364 = vsel %vm344, %v334, 0
    %v367 = vsel %vm344, %v335, 0
    %369 = vmatprep.subr.mxu0 0.0
    %370 = vmatpush1.msra.mxu0 0.0
    %371 = vmatprep.subr.mxu0 0.0
    %372 = vmatpush1.msra.mxu0 0.0
    %373 = vmatprep.subr.mxu0 0.0
    %374 = vmatpush1.msra.mxu0 0.0
    %375 = vmatprep.subr.mxu0 0.0
    %376 = vmatpush1.msra.mxu0 0.0
    %377 = vmatprep.subr.mxu0 0.0
    %378 = vmatpush1.msra.mxu0 0.0
    %379 = vmatprep.subr.mxu0 0.0
    %380 = vmatpush1.msra.mxu0 0.0
    %381 = vmatprep.subr.mxu0 0.0
    %382 = vmatpush1.msra.mxu0 0.0
    %383 = vmatprep.subr.mxu0 0.0
    %384 = vmatpush1.msra.mxu0 0.0
    %385 = vmatprep.subr.mxu0 0.0
    %386 = vmatpush1.msra.mxu0 %v255
    %387 = vmatprep.subr.mxu0 0.0
    %388 = vmatpush1.msra.mxu0 %v254
    %389 = vmatprep.subr.mxu0 0.0
    %390 = vmatpush1.msra.mxu0 %v253
    %391 = vmatprep.subr.mxu0 0.0
    %392 = vmatpush1.msra.mxu0 %v252
    %393 = vmatprep.subr.mxu0 0.0
    %394 = vmatpush1.msra.mxu0 %v251
    %395 = vmatprep.subr.mxu0 0.0
    %396 = vmatpush1.msra.mxu0 %v250
    %397 = vmatprep.subr.mxu0 0.0
    %398 = vmatpush1.msra.mxu0 %v249
    %399 = vmatprep.subr.mxu0 0.0
    %400 = vmatpush1.msra.mxu0 %v248
    %401 = vmatprep.subr.mxu0 0.0
    %402 = vmatpush2.msra.mxu0 0.0
    %403 = vmatprep.subr.mxu0 0.0
    %404 = vmatpush2.msra.mxu0 0.0
    %405 = vmatprep.subr.mxu0 0.0
    %406 = vmatpush2.msra.mxu0 0.0
    %407 = vmatprep.subr.mxu0 0.0
    %408 = vmatpush2.msra.mxu0 0.0
    %409 = vmatprep.subr.mxu0 0.0
    %410 = vmatpush2.msra.mxu0 0.0
    %411 = vmatprep.subr.mxu0 0.0
    %412 = vmatpush2.msra.mxu0 0.0
    %413 = vmatprep.subr.mxu0 0.0
    %414 = vmatpush2.msra.mxu0 0.0
    %415 = vmatprep.subr.mxu0 0.0
    %416 = vmatpush2.msra.mxu0 0.0
    %417 = vmatprep.subr.mxu0 0.0
    %418 = vmatpush2.msra.mxu0 0.0
    %419 = vmatprep.subr.mxu0 0.0
    %420 = vmatpush2.msra.mxu0 0.0
    %421 = vmatprep.subr.mxu0 0.0
    %422 = vmatpush2.msra.mxu0 0.0
    %423 = vmatprep.subr.mxu0 0.0
    %424 = vmatpush2.msra.mxu0 0.0
    %425 = vmatprep.subr.mxu0 0.0
    %426 = vmatpush2.msra.mxu0 0.0
    %427 = vmatprep.subr.mxu0 0.0
    %428 = vmatpush2.msra.mxu0 0.0
    %429 = vmatprep.subr.mxu0 0.0
    %430 = vmatpush2.msra.mxu0 0.0
    %431 = vmatprep.subr.mxu0 0.0
    %432 = vmatpush2.msra.mxu0 0.0
    %433 = vmatprep.mubr.f32.mxu0 0.0
    %434 = vmatmul.mubr.f32.gmra.mxu0 %v346
    %v435 = vpop.f32.mrf.mxu0
    %v436 = vadd.f32 %v275, %v435
    %v437 = vpop.f32.mrf.mxu0
    %438 = vmatprep.mubr.f32.mxu0 0.0
    %439 = vmatmul.mubr.f32.gmra.mxu0 %v349
    %v440 = vpop.f32.mrf.mxu0
    %v441 = vadd.f32 %v280, %v440
    %v442 = vpop.f32.mrf.mxu0
    %443 = vmatprep.mubr.f32.mxu0 0.0
    %444 = vmatmul.mubr.f32.gmra.mxu0 %v352
    %v445 = vpop.f32.mrf.mxu0
    %v446 = vadd.f32 %v285, %v445
    %v447 = vpop.f32.mrf.mxu0
    %448 = vmatprep.mubr.f32.mxu0 0.0
    %449 = vmatmul.mubr.f32.gmra.mxu0 %v355
    %v450 = vpop.f32.mrf.mxu0
    %v451 = vadd.f32 %v290, %v450
    %v452 = vpop.f32.mrf.mxu0
    %453 = vmatprep.mubr.f32.mxu0 0.0
    %454 = vmatmul.mubr.f32.gmra.mxu0 %v358
    %v455 = vpop.f32.mrf.mxu0
    %v456 = vadd.f32 %v295, %v455
    %v457 = vpop.f32.mrf.mxu0
    %458 = vmatprep.mubr.f32.mxu0 0.0
    %459 = vmatmul.mubr.f32.gmra.mxu0 %v361
    %v460 = vpop.f32.mrf.mxu0
    %v461 = vadd.f32 %v300, %v460
    %v462 = vpop.f32.mrf.mxu0
    %463 = vmatprep.mubr.f32.mxu0 0.0
    %464 = vmatmul.mubr.f32.gmra.mxu0 %v364
    %v465 = vpop.f32.mrf.mxu0
    %v466 = vadd.f32 %v305, %v465
    %v467 = vpop.f32.mrf.mxu0
    %468 = vmatprep.mubr.f32.mxu0 0.0
    %469 = vmatmul.mubr.f32.gmra.mxu0 %v367
    %v470 = vpop.f32.mrf.mxu0
    %v471 = vadd.f32 %v310, %v470
    %v472 = vpop.f32.mrf.mxu0
    %473 = vdwg.mxu0
    %v474 = vmax.f32 %v436, 0.0
    %v475 = vmax.f32 %v441, 0.0
    %v476 = vmax.f32 %v446, 0.0
    %v477 = vmax.f32 %v451, 0.0
    %v478 = vmax.f32 %v456, 0.0
    %v479 = vmax.f32 %v461, 0.0
    %v480 = vmax.f32 %v466, 0.0
    %v481 = vmax.f32 %v471, 0.0
    %v482 = vld [vmem:[%s5] sm:$0xff]
    %v483 = vld [vmem:[%s5 + $0x8] sm:$0xff]
    %v484 = vld [vmem:[%s5 + $0x10] sm:$0xff]
    %v485 = vld [vmem:[%s5 + $0x18] sm:$0xff]
    %v486 = vld [vmem:[%s5 + $0x20] sm:$0xff]
    %v487 = vld [vmem:[%s5 + $0x28] sm:$0xff]
    %v488 = vld [vmem:[%s5 + $0x30] sm:$0xff]
    %v489 = vld [vmem:[%s5 + $0x38] sm:$0xff]
    %s490 = sld [smem:[#allocation2]]
    %v491 = vstv %s490
    %492 = vxpose.xlu0.b32.start [1/16] %v482, 128
    %493 = vxpose.xlu0.b32.cont [2/16] %v483, 128
    %494 = vxpose.xlu0.b32.cont [3/16] %v484, 128
    %495 = vxpose.xlu0.b32.cont [4/16] %v485, 128
    %496 = vxpose.xlu0.b32.cont [5/16] %v486, 128
    %497 = vxpose.xlu0.b32.cont [6/16] %v487, 128
    %498 = vxpose.xlu0.b32.cont [7/16] %v488, 128
    %499 = vxpose.xlu0.b32.cont [8/16] %v489, 128
    %500 = vxpose.xlu0.b32.cont [9/16] 0.0, 128
    %501 = vxpose.xlu0.b32.cont [10/16] 0.0, 128
    %502 = vxpose.xlu0.b32.cont [11/16] 0.0, 128
    %503 = vxpose.xlu0.b32.cont [12/16] 0.0, 128
    %504 = vxpose.xlu0.b32.cont [13/16] 0.0, 128
    %505 = vxpose.xlu0.b32.cont [14/16] 0.0, 128
    %506 = vxpose.xlu0.b32.cont [15/16] 0.0, 128
    %507 = vxpose.xlu0.b32.end [16/16] 0.0, 128
    %v508 = vpop.trf.xlu0
    %v509 = vpop.trf.xlu0
    %v510 = vpop.trf.xlu0
    %v511 = vpop.trf.xlu0
    %v512 = vpop.trf.xlu0
    %v513 = vpop.trf.xlu0
    %v514 = vpop.trf.xlu0
    %v515 = vpop.trf.xlu0
    %v516 = vpop.trf.xlu0
    %v517 = vpop.trf.xlu0
    %v518 = vpop.trf.xlu0
    %v519 = vpop.trf.xlu0
    %v520 = vpop.trf.xlu0
    %v521 = vpop.trf.xlu0
    %v522 = vpop.trf.xlu0
    %v523 = vpop.trf.xlu0
    %v525 = vsel %vm344, %v508, 0
    %527 = vmatprep.subr.mxu0 0.0
    %528 = vmatpush1.msra.mxu0 0.0
    %529 = vmatprep.subr.mxu0 0.0
    %530 = vmatpush1.msra.mxu0 0.0
    %531 = vmatprep.subr.mxu0 0.0
    %532 = vmatpush1.msra.mxu0 0.0
    %533 = vmatprep.subr.mxu0 0.0
    %534 = vmatpush1.msra.mxu0 0.0
    %535 = vmatprep.subr.mxu0 0.0
    %536 = vmatpush1.msra.mxu0 0.0
    %537 = vmatprep.subr.mxu0 0.0
    %538 = vmatpush1.msra.mxu0 0.0
    %539 = vmatprep.subr.mxu0 0.0
    %540 = vmatpush1.msra.mxu0 0.0
    %541 = vmatprep.subr.mxu0 0.0
    %542 = vmatpush1.msra.mxu0 0.0
    %543 = vmatprep.subr.mxu0 0.0
    %544 = vmatpush1.msra.mxu0 %v481
    %545 = vmatprep.subr.mxu0 0.0
    %546 = vmatpush1.msra.mxu0 %v480
    %547 = vmatprep.subr.mxu0 0.0
    %548 = vmatpush1.msra.mxu0 %v479
    %549 = vmatprep.subr.mxu0 0.0
    %550 = vmatpush1.msra.mxu0 %v478
    %551 = vmatprep.subr.mxu0 0.0
    %552 = vmatpush1.msra.mxu0 %v477
    %553 = vmatprep.subr.mxu0 0.0
    %554 = vmatpush1.msra.mxu0 %v476
    %555 = vmatprep.subr.mxu0 0.0
    %556 = vmatpush1.msra.mxu0 %v475
    %557 = vmatprep.subr.mxu0 0.0
    %558 = vmatpush1.msra.mxu0 %v474
    %559 = vmatprep.subr.mxu0 0.0
    %560 = vmatpush2.msra.mxu0 0.0
    %561 = vmatprep.subr.mxu0 0.0
    %562 = vmatpush2.msra.mxu0 0.0
    %563 = vmatprep.subr.mxu0 0.0
    %564 = vmatpush2.msra.mxu0 0.0
    %565 = vmatprep.subr.mxu0 0.0
    %566 = vmatpush2.msra.mxu0 0.0
    %567 = vmatprep.subr.mxu0 0.0
    %568 = vmatpush2.msra.mxu0 0.0
    %569 = vmatprep.subr.mxu0 0.0
    %570 = vmatpush2.msra.mxu0 0.0
    %571 = vmatprep.subr.mxu0 0.0
    %572 = vmatpush2.msra.mxu0 0.0
    %573 = vmatprep.subr.mxu0 0.0
    %574 = vmatpush2.msra.mxu0 0.0
    %575 = vmatprep.subr.mxu0 0.0
    %576 = vmatpush2.msra.mxu0 0.0
    %577 = vmatprep.subr.mxu0 0.0
    %578 = vmatpush2.msra.mxu0 0.0
    %579 = vmatprep.subr.mxu0 0.0
    %580 = vmatpush2.msra.mxu0 0.0
    %581 = vmatprep.subr.mxu0 0.0
    %582 = vmatpush2.msra.mxu0 0.0
    %583 = vmatprep.subr.mxu0 0.0
    %584 = vmatpush2.msra.mxu0 0.0
    %585 = vmatprep.subr.mxu0 0.0
    %586 = vmatpush2.msra.mxu0 0.0
    %587 = vmatprep.subr.mxu0 0.0
    %588 = vmatpush2.msra.mxu0 0.0
    %589 = vmatprep.subr.mxu0 0.0
    %590 = vmatpush2.msra.mxu0 0.0
    %591 = vmatprep.mubr.f32.mxu0 0.0
    %592 = vmatmul.mubr.f32.gmra.mxu0 %v525
    %v593 = vpop.f32.mrf.mxu0
    %v594 = vadd.f32 %v491, %v593
    %v595 = vpop.f32.mrf.mxu0
    %596 = vdwg.mxu0
    %v597 = vxor.u32 %v594, 2147483648
    %v598 = vmul.f32 %v597, 1.442695
    %v599 = vpow.pop %v598
    %v600 = vadd.f32 %v599, 1.0
    %v601 = vrcp.pop %v600
    %v602 = vmul.f32 1.0, %v601
    %v603 = vsub.f32 0.0, %v602
    %604 = vst [vmem:[#allocation3] sm:$0x1] %v603
    // Predicated region
    $region30: #{tpu_custom_call.1} parent=1 // pred_check
      _
    $region31: #{tpu_custom_call.1} parent=1 // pred_check_branch
      %606 = sbr.rel (0) target = $region33
    $region32: #{tpu_custom_call.1} parent=1 // pred_region
      %s608 = ssub.s32 16, 16
      %609 = vsyncadd [#allocation4], %s608
      %s611 = sshll.u32 [#allocation3], 4
      %s612 = int_to_ptr.vmem [resolvable:$true] %s611
      %614 = dma.vmem_to_hbm [thread:$0]  %s612, 16, %s7, [#allocation4]
    $region33: #{tpu_custom_call.1} parent=1 // pred_fallthru
      _
    // Predicated region
    $region34: #{tpu_custom_call.1} parent=1 // pred_check
      _
    $region35: #{tpu_custom_call.1} parent=1 // pred_check_branch
      %616 = sbr.rel (0) target = $region37
    $region36: #{tpu_custom_call.1} parent=1 // pred_region
      %617 = dma.done [#allocation4], 16
    $region37: #{tpu_custom_call.1} parent=1 // pred_fallthru
      _
    %618 = vsyncpa [#allocation4], 1

</llo_original>
